<compile_context>
chip_gen: v6e
topology: v6e:2x2x1
jax: 0.10.0
libtpu: 0.0.40
codegen_flags: <defaults>
</compile_context>

<pallas_src>
import jax
import jax.numpy as jnp
from jax import lax
from jax.experimental import pallas as pl
from jax.experimental.pallas import tpu as pltpu


def _make_kernel(bt, C, L, W, K):
    pad = K // 2
    KK = K * K
    CCH = 8  # channels reduced per chunk (one f32 sublane group)

    def kernel(x_ref, wm_ref, b_ref, o_ref):
        # x_ref : (bt, C, L)    input block, lane-dense (L = H*W)
        # wm_ref: (2*K*K, L)    per-tap conv weights with zero-padding validity folded in
        #                       (rows [0, KK) -> channel-max map, [KK, 2KK) -> channel-avg map)
        # b_ref : (1,)  SMEM    conv bias
        # o_ref : (bt, 1, L)    attention map block
        # ---- fused channel max + mean: single pass over the block, chunked over C ----
        c1 = min(CCH, C)
        chunk = x_ref[:, 0:c1, :]
        mx = jnp.max(chunk, axis=1)                           # (bt, L), input dtype
        sm = jnp.sum(chunk.astype(jnp.float32), axis=1)       # (bt, L) f32
        for c0 in range(CCH, C, CCH):
            c1 = min(c0 + CCH, C)
            chunk = x_ref[:, c0:c1, :]
            mx = jnp.maximum(mx, jnp.max(chunk, axis=1))
            sm = sm + jnp.sum(chunk.astype(jnp.float32), axis=1)
        mx = mx.astype(jnp.float32)                           # (bt, L)
        av = sm * (1.0 / C)                                   # (bt, L)

        # ---- K x K "same" conv: lane rolls (XLU) + pre-masked per-tap weights (VPU) ----
        acc = jnp.zeros((bt, L), jnp.float32)
        t = 0
        for kh in range(K):
            dh = kh - pad
            for kw in range(K):
                dw = kw - pad
                # want shifted[l] = pooled[l + dh*W + dw]; out-of-image taps are zeroed by wm.
                shift = (-(dh * W + dw)) % L
                mx_s = pltpu.roll(mx, shift, axis=1) if shift else mx
                av_s = pltpu.roll(av, shift, axis=1) if shift else av
                acc = acc + mx_s * wm_ref[t:t + 1, :] + av_s * wm_ref[KK + t:KK + t + 1, :]
                t += 1

        z = acc + b_ref[0]
        # sigmoid(z) == 0.5 * tanh(0.5 * z) + 0.5  -> single EUP transcendental
        o_ref[:, 0, :] = (0.5 * jnp.tanh(0.5 * z) + 0.5).astype(o_ref.dtype)

    return kernel


def _round_up(v, m):
    return (v + m - 1) // m * m


def _padded_vmem_bytes(shape, dtype):
    # (8,128)-padded VMEM footprint of one buffer of `shape`.
    isz = jnp.dtype(dtype).itemsize
    sub_mult = 8 * max(1, 4 // isz)          # 8 for f32, 16 for bf16, 32 for int8
    lane = _round_up(shape[-1], 128)
    sub = _round_up(shape[-2], sub_mult) if len(shape) >= 2 else 1
    lead = 1
    for d in shape[:-2]:
        lead *= d
    return lead * sub * lane * isz


def spatial_attention_nopara(x, conv_w, conv_b):
    """x: (B, C, H, W); conv_w: (1, 2, K, K); conv_b: (1,). Returns (B, C, H, W) attention."""
    B, C, H, W = x.shape
    K = conv_w.shape[-1]
    assert K % 2 == 1, "Odd kernel size required"
    pad = K // 2
    KK = K * K
    L = H * W
    itemsize = jnp.dtype(x.dtype).itemsize

    # ---- lane-dense layout: flatten spatial dims so the kernel minor dim is L = H*W ----
    # TODO(synk): if H*W is not a multiple of 128, pad the flattened spatial axis up to 128 in
    # the wrapper (mask the tail via wmask) so stores stay unmasked and rolls stay aligned.
    x_flat = x.reshape(B, C, L)

    # ---- per-tap conv weights with the zero-padding validity mask folded in (tiny, one-off) ----
    hrow = jnp.repeat(jnp.arange(H, dtype=jnp.int32), W)      # (L,) row index of each flat pixel
    wcol = jnp.tile(jnp.arange(W, dtype=jnp.int32), H)        # (L,) col index of each flat pixel
    valid = []
    for kh in range(K):
        dh = kh - pad
        for kw in range(K):
            dw = kw - pad
            ok = ((hrow + dh >= 0) & (hrow + dh < H) &
                  (wcol + dw >= 0) & (wcol + dw < W))
            valid.append(ok)
    valid = jnp.stack(valid, axis=0).astype(jnp.float32)       # (KK, L)
    # torch.cat([max_pool, avg_pool], dim=1): in-channel 0 of the conv sees the MAX map.
    w2 = conv_w.reshape(2, KK).astype(jnp.float32)
    wmask = jnp.concatenate([w2[0][:, None] * valid,
                             w2[1][:, None] * valid], axis=0)  # (2*KK, L)
    bias = conv_b.reshape(1).astype(jnp.float32)

    # ---- generation-aware block sizing ----
    try:
        vmem_cap = int(pltpu.get_tpu_info().vmem_capacity_bytes)
    except Exception:
        vmem_cap = 64 << 20
    target_block_bytes = (4 << 20) if vmem_cap <= (64 << 20) else (8 << 20)

    row_bytes = C * L * itemsize
    bt = min(B,
             max(1, target_block_bytes // row_bytes),
             max(1, (256 << 10) // (L * 4)))   # keep the f32 (bt, L) accumulators register-friendly
    # megacore: prefer >= 2 grid steps if halving keeps blocks big enough to amortize step overhead
    if bt >= B and B >= 2 and (B // 2) * row_bytes >= (1 << 20):
        bt = B // 2
    while B % bt:
        bt -= 1
    # TODO(synk): when B == 1 (or blocks are forced tiny), add a halo-aware spatial tile axis
    # marked "parallel" so both v7x TensorCores get work instead of shrinking the batch block.

    # ---- vmem limit from the padded footprint (double-buffered in/out + temporaries) ----
    in_blk = _padded_vmem_bytes((bt, C, L), x.dtype)
    out_blk = _padded_vmem_bytes((bt, 1, L), x.dtype)
    wm_blk = _padded_vmem_bytes((2 * KK, L), jnp.float32)
    tmp_blk = 8 * _padded_vmem_bytes((bt, L), jnp.float32)     # mx/av/acc/rolled temporaries
    need = 2 * in_blk + 2 * out_blk + 2 * wm_blk + tmp_blk + (2 << 20)
    vmem_limit = int(min(max(need, 8 << 20), int(vmem_cap * 0.9)))

    cost = pl.CostEstimate(
        flops=int(2 * B * C * L + B * L * (4 * KK + 6)),
        transcendentals=int(B * L),
        bytes_accessed=int(B * C * L * itemsize + B * L * itemsize + 2 * KK * L * 4 + 4),
    )

    kernel = _make_kernel(bt, C, L, W, K)
    att = pl.pallas_call(
        kernel,
        out_shape=jax.ShapeDtypeStruct((B, 1, L), x.dtype),
        grid_spec=pltpu.PrefetchScalarGridSpec(
            num_scalar_prefetch=0,
            grid=(B // bt,),
            in_specs=[
                pl.BlockSpec((bt, C, L), lambda b: (b, 0, 0)),
                pl.BlockSpec((2 * KK, L), lambda b: (0, 0)),          # masked conv taps (resident)
                pl.BlockSpec(memory_space=pltpu.MemorySpace.SMEM),    # bias
            ],
            out_specs=pl.BlockSpec((bt, 1, L), lambda b: (b, 0, 0)),
        ),
        compiler_params=pltpu.CompilerParams(
            dimension_semantics=("parallel",),
            vmem_limit_bytes=vmem_limit,
        ),
        cost_estimate=cost,
    )(x_flat, wmask, bias)

    # PyTorch module returns the map repeated over channels; broadcast outside the kernel
    # (free / fused by XLA with any downstream consumer instead of burning kernel HBM writes).
    att = att.reshape(B, 1, H, W)
    return jnp.broadcast_to(att, (B, C, H, W))


def _reference(x, conv_w, conv_b):
    # plain-JAX reference mirroring the PyTorch forward
    mx = jnp.max(x, axis=1, keepdims=True)             # (B,1,H,W)
    av = jnp.mean(x, axis=1, keepdims=True)            # (B,1,H,W)
    pool = jnp.concatenate([mx, av], axis=1)           # (B,2,H,W)
    K = conv_w.shape[-1]
    pad = K // 2
    conv = lax.conv_general_dilated(
        pool, conv_w, window_strides=(1, 1), padding=((pad, pad), (pad, pad)),
        dimension_numbers=("NCHW", "OIHW", "NCHW"),
    ) + conv_b.reshape(1, 1, 1, 1)
    att = jax.nn.sigmoid(conv)                         # (B,1,H,W)
    return jnp.broadcast_to(att, x.shape)


if __name__ == "__main__":
    B, C, H, W = 2, 4, 16, 16
    K = 3

    key = jax.random.PRNGKey(0)
    kx, kw, kb = jax.random.split(key, 3)
    x = jax.random.normal(kx, (B, C, H, W), dtype=jnp.float32)

    # deterministic conv2d(2 -> 1, k x k) params (PyTorch-style uniform fan-in init)
    fan_in = 2 * K * K
    bound = 1.0 / (fan_in ** 0.5)
    conv_w = jax.random.uniform(kw, (1, 2, K, K), jnp.float32, -bound, bound)
    conv_b = jax.random.uniform(kb, (1,), jnp.float32, -bound, bound)

    out = spatial_attention_nopara(x, conv_w, conv_b)
    out = jax.block_until_ready(out)

    ref = _reference(x, conv_w, conv_b)
    assert out.shape == (B, C, H, W)
    assert jnp.allclose(out, ref, atol=1e-5, rtol=1e-5)

    print("KERNEL_OK")
</pallas_src>

<mosaic_0001>
module attributes {stable_mosaic.version = 11 : i64} {
  func.func @kernel(%arg0: i32, %arg1: memref<2x4x256xf32, #tpu.memory_space<vmem>>, %arg2: memref<18x256xf32, #tpu.memory_space<vmem>>, %arg3: memref<1xf32, #tpu.memory_space<smem>>, %arg4: memref<2x1x256xf32, #tpu.memory_space<vmem>>) attributes {dimension_semantics = [#tpu.dimension_semantics<parallel>], iteration_bounds = array<i64: 1>, scalar_prefetch = 0 : i64, scratch_operands = 0 : i64, tpu.core_type = #tpu.core_type<tc>, window_params = [{transform_indices = @transform_0, window_bounds = array<i64: 2, 4, 256>}, {pipeline_mode = #tpu.pipeline_mode<synchronous>, transform_indices = @transform_1, window_bounds = array<i64: 18, 256>}, {transform_indices = @transform_2, window_bounds = array<i64: 1>}, {transform_indices = @transform_3, window_bounds = array<i64: 2, 1, 256>}]} {
    %c0 = arith.constant 0 : index
    %c0_0 = arith.constant 0 : index
    %c0_1 = arith.constant 0 : index
    %0 = vector.load %arg1[%c0, %c0_0, %c0_1] : memref<2x4x256xf32, #tpu.memory_space<vmem>>, vector<2x4x256xf32>
    %cst = arith.constant dense<0xFF800000> : vector<2x256xf32>
    %1 = vector.multi_reduction <maximumf>, %0, %cst [1] : vector<2x4x256xf32> to vector<2x256xf32>
    %cst_2 = arith.constant dense<0.000000e+00> : vector<2x256xf32>
    %2 = vector.multi_reduction <add>, %0, %cst_2 [1] : vector<2x4x256xf32> to vector<2x256xf32>
    %cst_3 = arith.constant 2.500000e-01 : f32
    %3 = vector.broadcast %cst_3 : f32 to vector<2x256xf32>
    %4 = arith.mulf %2, %3 : vector<2x256xf32>
    %cst_4 = arith.constant 0.000000e+00 : f32
    %5 = vector.broadcast %cst_4 : f32 to vector<2x256xf32>
    %c17_i32 = arith.constant 17 : i32
    %6 = tpu.dynamic_rotate %1 by %c17_i32 dim 1 : vector<2x256xf32>, i32 -> vector<2x256xf32>
    %c17_i32_5 = arith.constant 17 : i32
    %7 = tpu.dynamic_rotate %4 by %c17_i32_5 dim 1 : vector<2x256xf32>, i32 -> vector<2x256xf32>
    %c0_6 = arith.constant 0 : index
    %c0_7 = arith.constant 0 : index
    %8 = vector.load %arg2[%c0_6, %c0_7] : memref<18x256xf32, #tpu.memory_space<vmem>>, vector<1x256xf32>
    %9 = vector.broadcast %8 : vector<1x256xf32> to vector<2x256xf32>
    %10 = arith.mulf %6, %9 : vector<2x256xf32>
    %11 = arith.addf %5, %10 : vector<2x256xf32>
    %c9 = arith.constant 9 : index
    %c0_8 = arith.constant 0 : index
    %12 = vector.load %arg2[%c9, %c0_8] : memref<18x256xf32, #tpu.memory_space<vmem>>, vector<1x256xf32>
    %13 = vector.broadcast %12 : vector<1x256xf32> to vector<2x256xf32>
    %14 = arith.mulf %7, %13 : vector<2x256xf32>
    %15 = arith.addf %11, %14 : vector<2x256xf32>
    %c16_i32 = arith.constant 16 : i32
    %16 = tpu.dynamic_rotate %1 by %c16_i32 dim 1 : vector<2x256xf32>, i32 -> vector<2x256xf32>
    %c16_i32_9 = arith.constant 16 : i32
    %17 = tpu.dynamic_rotate %4 by %c16_i32_9 dim 1 : vector<2x256xf32>, i32 -> vector<2x256xf32>
    %c1 = arith.constant 1 : index
    %c0_10 = arith.constant 0 : index
    %18 = vector.load %arg2[%c1, %c0_10] : memref<18x256xf32, #tpu.memory_space<vmem>>, vector<1x256xf32>
    %19 = vector.broadcast %18 : vector<1x256xf32> to vector<2x256xf32>
    %20 = arith.mulf %16, %19 : vector<2x256xf32>
    %21 = arith.addf %15, %20 : vector<2x256xf32>
    %c10 = arith.constant 10 : index
    %c0_11 = arith.constant 0 : index
    %22 = vector.load %arg2[%c10, %c0_11] : memref<18x256xf32, #tpu.memory_space<vmem>>, vector<1x256xf32>
    %23 = vector.broadcast %22 : vector<1x256xf32> to vector<2x256xf32>
    %24 = arith.mulf %17, %23 : vector<2x256xf32>
    %25 = arith.addf %21, %24 : vector<2x256xf32>
    %c15_i32 = arith.constant 15 : i32
    %26 = tpu.dynamic_rotate %1 by %c15_i32 dim 1 : vector<2x256xf32>, i32 -> vector<2x256xf32>
    %c15_i32_12 = arith.constant 15 : i32
    %27 = tpu.dynamic_rotate %4 by %c15_i32_12 dim 1 : vector<2x256xf32>, i32 -> vector<2x256xf32>
    %c2 = arith.constant 2 : index
    %c0_13 = arith.constant 0 : index
    %28 = vector.load %arg2[%c2, %c0_13] : memref<18x256xf32, #tpu.memory_space<vmem>>, vector<1x256xf32>
    %29 = vector.broadcast %28 : vector<1x256xf32> to vector<2x256xf32>
    %30 = arith.mulf %26, %29 : vector<2x256xf32>
    %31 = arith.addf %25, %30 : vector<2x256xf32>
    %c11 = arith.constant 11 : index
    %c0_14 = arith.constant 0 : index
    %32 = vector.load %arg2[%c11, %c0_14] : memref<18x256xf32, #tpu.memory_space<vmem>>, vector<1x256xf32>
    %33 = vector.broadcast %32 : vector<1x256xf32> to vector<2x256xf32>
    %34 = arith.mulf %27, %33 : vector<2x256xf32>
    %35 = arith.addf %31, %34 : vector<2x256xf32>
    %c1_i32 = arith.constant 1 : i32
    %36 = tpu.dynamic_rotate %1 by %c1_i32 dim 1 : vector<2x256xf32>, i32 -> vector<2x256xf32>
    %c1_i32_15 = arith.constant 1 : i32
    %37 = tpu.dynamic_rotate %4 by %c1_i32_15 dim 1 : vector<2x256xf32>, i32 -> vector<2x256xf32>
    %c3 = arith.constant 3 : index
    %c0_16 = arith.constant 0 : index
    %38 = vector.load %arg2[%c3, %c0_16] : memref<18x256xf32, #tpu.memory_space<vmem>>, vector<1x256xf32>
    %39 = vector.broadcast %38 : vector<1x256xf32> to vector<2x256xf32>
    %40 = arith.mulf %36, %39 : vector<2x256xf32>
    %41 = arith.addf %35, %40 : vector<2x256xf32>
    %c12 = arith.constant 12 : index
    %c0_17 = arith.constant 0 : index
    %42 = vector.load %arg2[%c12, %c0_17] : memref<18x256xf32, #tpu.memory_space<vmem>>, vector<1x256xf32>
    %43 = vector.broadcast %42 : vector<1x256xf32> to vector<2x256xf32>
    %44 = arith.mulf %37, %43 : vector<2x256xf32>
    %45 = arith.addf %41, %44 : vector<2x256xf32>
    %c4 = arith.constant 4 : index
    %c0_18 = arith.constant 0 : index
    %46 = vector.load %arg2[%c4, %c0_18] : memref<18x256xf32, #tpu.memory_space<vmem>>, vector<1x256xf32>
    %47 = vector.broadcast %46 : vector<1x256xf32> to vector<2x256xf32>
    %48 = arith.mulf %1, %47 : vector<2x256xf32>
    %49 = arith.addf %45, %48 : vector<2x256xf32>
    %c13 = arith.constant 13 : index
    %c0_19 = arith.constant 0 : index
    %50 = vector.load %arg2[%c13, %c0_19] : memref<18x256xf32, #tpu.memory_space<vmem>>, vector<1x256xf32>
    %51 = vector.broadcast %50 : vector<1x256xf32> to vector<2x256xf32>
    %52 = arith.mulf %4, %51 : vector<2x256xf32>
    %53 = arith.addf %49, %52 : vector<2x256xf32>
    %c255_i32 = arith.constant 255 : i32
    %54 = tpu.dynamic_rotate %1 by %c255_i32 dim 1 : vector<2x256xf32>, i32 -> vector<2x256xf32>
    %c255_i32_20 = arith.constant 255 : i32
    %55 = tpu.dynamic_rotate %4 by %c255_i32_20 dim 1 : vector<2x256xf32>, i32 -> vector<2x256xf32>
    %c5 = arith.constant 5 : index
    %c0_21 = arith.constant 0 : index
    %56 = vector.load %arg2[%c5, %c0_21] : memref<18x256xf32, #tpu.memory_space<vmem>>, vector<1x256xf32>
    %57 = vector.broadcast %56 : vector<1x256xf32> to vector<2x256xf32>
    %58 = arith.mulf %54, %57 : vector<2x256xf32>
    %59 = arith.addf %53, %58 : vector<2x256xf32>
    %c14 = arith.constant 14 : index
    %c0_22 = arith.constant 0 : index
    %60 = vector.load %arg2[%c14, %c0_22] : memref<18x256xf32, #tpu.memory_space<vmem>>, vector<1x256xf32>
    %61 = vector.broadcast %60 : vector<1x256xf32> to vector<2x256xf32>
    %62 = arith.mulf %55, %61 : vector<2x256xf32>
    %63 = arith.addf %59, %62 : vector<2x256xf32>
    %c241_i32 = arith.constant 241 : i32
    %64 = tpu.dynamic_rotate %1 by %c241_i32 dim 1 : vector<2x256xf32>, i32 -> vector<2x256xf32>
    %c241_i32_23 = arith.constant 241 : i32
    %65 = tpu.dynamic_rotate %4 by %c241_i32_23 dim 1 : vector<2x256xf32>, i32 -> vector<2x256xf32>
    %c6 = arith.constant 6 : index
    %c0_24 = arith.constant 0 : index
    %66 = vector.load %arg2[%c6, %c0_24] : memref<18x256xf32, #tpu.memory_space<vmem>>, vector<1x256xf32>
    %67 = vector.broadcast %66 : vector<1x256xf32> to vector<2x256xf32>
    %68 = arith.mulf %64, %67 : vector<2x256xf32>
    %69 = arith.addf %63, %68 : vector<2x256xf32>
    %c15 = arith.constant 15 : index
    %c0_25 = arith.constant 0 : index
    %70 = vector.load %arg2[%c15, %c0_25] : memref<18x256xf32, #tpu.memory_space<vmem>>, vector<1x256xf32>
    %71 = vector.broadcast %70 : vector<1x256xf32> to vector<2x256xf32>
    %72 = arith.mulf %65, %71 : vector<2x256xf32>
    %73 = arith.addf %69, %72 : vector<2x256xf32>
    %c240_i32 = arith.constant 240 : i32
    %74 = tpu.dynamic_rotate %1 by %c240_i32 dim 1 : vector<2x256xf32>, i32 -> vector<2x256xf32>
    %c240_i32_26 = arith.constant 240 : i32
    %75 = tpu.dynamic_rotate %4 by %c240_i32_26 dim 1 : vector<2x256xf32>, i32 -> vector<2x256xf32>
    %c7 = arith.constant 7 : index
    %c0_27 = arith.constant 0 : index
    %76 = vector.load %arg2[%c7, %c0_27] : memref<18x256xf32, #tpu.memory_space<vmem>>, vector<1x256xf32>
    %77 = vector.broadcast %76 : vector<1x256xf32> to vector<2x256xf32>
    %78 = arith.mulf %74, %77 : vector<2x256xf32>
    %79 = arith.addf %73, %78 : vector<2x256xf32>
    %c16 = arith.constant 16 : index
    %c0_28 = arith.constant 0 : index
    %80 = vector.load %arg2[%c16, %c0_28] : memref<18x256xf32, #tpu.memory_space<vmem>>, vector<1x256xf32>
    %81 = vector.broadcast %80 : vector<1x256xf32> to vector<2x256xf32>
    %82 = arith.mulf %75, %81 : vector<2x256xf32>
    %83 = arith.addf %79, %82 : vector<2x256xf32>
    %c239_i32 = arith.constant 239 : i32
    %84 = tpu.dynamic_rotate %1 by %c239_i32 dim 1 : vector<2x256xf32>, i32 -> vector<2x256xf32>
    %c239_i32_29 = arith.constant 239 : i32
    %85 = tpu.dynamic_rotate %4 by %c239_i32_29 dim 1 : vector<2x256xf32>, i32 -> vector<2x256xf32>
    %c8 = arith.constant 8 : index
    %c0_30 = arith.constant 0 : index
    %86 = vector.load %arg2[%c8, %c0_30] : memref<18x256xf32, #tpu.memory_space<vmem>>, vector<1x256xf32>
    %87 = vector.broadcast %86 : vector<1x256xf32> to vector<2x256xf32>
    %88 = arith.mulf %84, %87 : vector<2x256xf32>
    %89 = arith.addf %83, %88 : vector<2x256xf32>
    %c17 = arith.constant 17 : index
    %c0_31 = arith.constant 0 : index
    %90 = vector.load %arg2[%c17, %c0_31] : memref<18x256xf32, #tpu.memory_space<vmem>>, vector<1x256xf32>
    %91 = vector.broadcast %90 : vector<1x256xf32> to vector<2x256xf32>
    %92 = arith.mulf %85, %91 : vector<2x256xf32>
    %93 = arith.addf %89, %92 : vector<2x256xf32>
    %c0_32 = arith.constant 0 : index
    %94 = memref.load %arg3[%c0_32] : memref<1xf32, #tpu.memory_space<smem>>
    %95 = vector.broadcast %94 : f32 to vector<2x256xf32>
    %96 = arith.addf %93, %95 : vector<2x256xf32>
    %cst_33 = arith.constant 5.000000e-01 : f32
    %97 = vector.broadcast %cst_33 : f32 to vector<2x256xf32>
    %98 = arith.mulf %97, %96 : vector<2x256xf32>
    %99 = math.tanh %98 : vector<2x256xf32>
    %cst_34 = arith.constant 5.000000e-01 : f32
    %100 = vector.broadcast %cst_34 : f32 to vector<2x256xf32>
    %101 = arith.mulf %100, %99 : vector<2x256xf32>
    %cst_35 = arith.constant 5.000000e-01 : f32
    %102 = vector.broadcast %cst_35 : f32 to vector<2x256xf32>
    %103 = arith.addf %101, %102 : vector<2x256xf32>
    %c0_36 = arith.constant 0 : index
    %c0_37 = arith.constant 0 : index
    %c0_38 = arith.constant 0 : index
    %104 = vector.load %arg4[%c0_36, %c0_37, %c0_38] : memref<2x1x256xf32, #tpu.memory_space<vmem>>, vector<2x1x256xf32>
    %105 = vector.shape_cast %104 : vector<2x1x256xf32> to vector<2x256xf32>
    %106 = vector.shape_cast %103 : vector<2x256xf32> to vector<2x1x256xf32>
    tpu.vector_store %arg4[%c0_36, %c0_37, %c0_38], %106 {strides = array<i32>} : memref<2x1x256xf32, #tpu.memory_space<vmem>>, vector<2x1x256xf32>,
    return
  }
  func.func @transform_0(%arg0: i32) -> (i32, i32, i32) {
    %c0_i32 = arith.constant 0 : i32
    %c0_i32_0 = arith.constant 0 : i32
    %c0_i32_1 = arith.constant 0 : i32
    return %arg0, %c0_i32, %c0_i32_0 : i32, i32, i32
  }
  func.func @transform_1(%arg0: i32) -> (i32, i32) {
    %c0_i32 = arith.constant 0 : i32
    %c0_i32_0 = arith.constant 0 : i32
    %c0_i32_1 = arith.constant 0 : i32
    return %c0_i32, %c0_i32_0 : i32, i32
  }
  func.func @transform_2(%arg0: i32) -> i32 {
    %c0_i32 = arith.constant 0 : i32
    %c0_i32_0 = arith.constant 0 : i32
    return %c0_i32 : i32
  }
  func.func @transform_3(%arg0: i32) -> (i32, i32, i32) {
    %c0_i32 = arith.constant 0 : i32
    %c0_i32_0 = arith.constant 0 : i32
    %c0_i32_1 = arith.constant 0 : i32
    return %arg0, %c0_i32, %c0_i32_0 : i32, i32, i32
  }
}

</mosaic_0001>

<llo_original>
// kernel: tpu_custom_call.1
$region0: #{tpu_custom_call.1}
  #allocation0 [shape = 'u32[]', space=smem, size = 0x4, offset = 0x4, fixed_abs, tag = 'smem constant byte address 0x4 - core index']
  #allocation1 [shape = 'u32[144,128]{1,0:T(1,128)}', space=vmem, size = 0x12000, scoped, tag = 'internal scratch']
  #allocation2 [shape = 'f32[1]{0:T(128)S(6)}', space=smem, size = 0x200, scoped, tag = 'scoped memory for tpu_custom_call.1']
  %s0 = inlined_call_operand.hbm [shape: f32[2,4,256], index: 0, kind: input, shape index: {}]
  %s1 = inlined_call_operand.hbm [shape: f32[18,256], index: 1, kind: input, shape index: {}]
  %s2 = inlined_call_operand.<no memory space> [shape: f32[1], index: 2, kind: input, shape index: {}]
  %s3 = inlined_call_operand.hbm [shape: f32[2,1,256], index: 3, kind: output, shape index: {}]
  %s4 = sld [smem:[#allocation0]]
  $region30: #{tpu_custom_call.1} parent=0
    _
  %s6 = ssub.s32 1, %s4
  %s7 = scalar_select 0, %s6, %s4
  %8 = sst [smem:[#allocation2]] %s2
  $region1: #{tpu_custom_call.1} parent=0
    #allocation3 [shape = 'u8[8192]{0}', space=vmem, size = 0x2000, scoped, tag = 'input window, operand 0, single buffered']
    #allocation4 [shape = 's32[1]{0}', space=sflag, size = 0x4, scoped, tag = 'scoped memory for tpu_custom_call.1']
    #allocation5 [shape = 's32[1]{0}', space=sflag, size = 0x4, scoped, tag = 'scoped memory for tpu_custom_call.1']
    #allocation6 [shape = 'u8[24576]{0}', space=vmem, size = 0x6000, scoped, tag = 'input window, operand 1, single buffered']
    #allocation7 [shape = 's32[1]{0}', space=sflag, size = 0x4, scoped, tag = 'scoped memory for tpu_custom_call.1']
    #allocation8 [shape = 'u8[2048]{0}', space=vmem, size = 0x800, scoped, tag = 'output window, operand 0, single buffered']
    %9 = vsyncpa [#allocation4], 0
    %10 = vsyncpa [#allocation7], 0
    %11 = vsyncpa [#allocation5], 0
    // Predicated region
    $region2: #{tpu_custom_call.1} parent=1 // pred_check
      _
    $region3: #{tpu_custom_call.1} parent=1 // pred_check_branch
      %13 = sbr.rel (0) target = $region5
    $region4: #{tpu_custom_call.1} parent=1 // pred_region
      %s15 = ssub.s32 256, 256
      %16 = vsyncadd [#allocation4], %s15
      %s17 = sshll.u32 [#allocation3], 4
      %s18 = int_to_ptr.vmem [resolvable:$true] %s17
      %23 = dma.hbm_to_vmem [thread:$0]  %s0, 256, %s18, [#allocation4], 128, 128, 8
    $region5: #{tpu_custom_call.1} parent=1 // pred_fallthru
      _
    // Predicated region
    $region6: #{tpu_custom_call.1} parent=1 // pred_check
      _
    $region7: #{tpu_custom_call.1} parent=1 // pred_check_branch
      %25 = sbr.rel (0) target = $region9
    $region8: #{tpu_custom_call.1} parent=1 // pred_region
      %s27 = ssub.s32 768, 768
      %28 = vsyncadd [#allocation7], %s27
      %s29 = sshll.u32 [#allocation6], 4
      %s30 = int_to_ptr.vmem [resolvable:$true] %s29
      %35 = dma.hbm_to_vmem [thread:$0]  %s1, 768, %s30, [#allocation7], 256, 256, 16
    $region9: #{tpu_custom_call.1} parent=1 // pred_fallthru
      _
    // Predicated region
    $region10: #{tpu_custom_call.1} parent=1 // pred_check
      _
    $region11: #{tpu_custom_call.1} parent=1 // pred_check_branch
      %37 = sbr.rel (0) target = $region13
    $region12: #{tpu_custom_call.1} parent=1 // pred_region
      _
    $region13: #{tpu_custom_call.1} parent=1 // pred_fallthru
      _
    // Predicated region
    $region14: #{tpu_custom_call.1} parent=1 // pred_check
      _
    $region15: #{tpu_custom_call.1} parent=1 // pred_check_branch
      %39 = sbr.rel (0) target = $region17
    $region16: #{tpu_custom_call.1} parent=1 // pred_region
      %40 = dma.done [#allocation4], 256
    $region17: #{tpu_custom_call.1} parent=1 // pred_fallthru
      _
    // Predicated region
    $region18: #{tpu_custom_call.1} parent=1 // pred_check
      _
    $region19: #{tpu_custom_call.1} parent=1 // pred_check_branch
      %42 = sbr.rel (0) target = $region21
    $region20: #{tpu_custom_call.1} parent=1 // pred_region
      %43 = dma.done [#allocation7], 768
    $region21: #{tpu_custom_call.1} parent=1 // pred_fallthru
      _
    %v44 = vld [vmem:[#allocation3] sm:$0xff]
    %v45 = vld [vmem:[#allocation3 + $0x8] sm:$0xff]
    %v48 = vcombine.high %v44, %v44
    %v49 = vcombine.high %v45, %v45
    %vm52 = vcmask 1043456
    %v53 = vsel %vm52, %v44, -inf
    %v54 = vrot.slane %v53, 4
    %v55 = vmax.f32 %v53, %v54
    %v56 = vrot.slane %v55, 2
    %v57 = vmax.f32 %v55, %v56
    %v58 = vrot.slane %v57, 1
    %v59 = vmax.f32 %v57, %v58
    %v60 = vsel %vm52, %v48, -inf
    %v61 = vrot.slane %v60, 4
    %v62 = vmax.f32 %v60, %v61
    %v63 = vrot.slane %v62, 2
    %v64 = vmax.f32 %v62, %v63
    %v65 = vrot.slane %v64, 1
    %v66 = vmax.f32 %v64, %v65
    %v67 = vsel %vm52, %v45, -inf
    %v68 = vrot.slane %v67, 4
    %v69 = vmax.f32 %v67, %v68
    %v70 = vrot.slane %v69, 2
    %v71 = vmax.f32 %v69, %v70
    %v72 = vrot.slane %v71, 1
    %v73 = vmax.f32 %v71, %v72
    %v74 = vsel %vm52, %v49, -inf
    %v75 = vrot.slane %v74, 4
    %v76 = vmax.f32 %v74, %v75
    %v77 = vrot.slane %v76, 2
    %v78 = vmax.f32 %v76, %v77
    %v79 = vrot.slane %v78, 1
    %v80 = vmax.f32 %v78, %v79
    %v81 = vsel %vm52, %v44, 0.0
    %v82 = vrot.slane %v81, 4
    %v83 = vadd.f32 %v81, %v82
    %v84 = vrot.slane %v83, 2
    %v85 = vadd.f32 %v83, %v84
    %v86 = vrot.slane %v85, 1
    %v87 = vadd.f32 %v85, %v86
    %v88 = vsel %vm52, %v48, 0.0
    %v89 = vrot.slane %v88, 4
    %v90 = vadd.f32 %v88, %v89
    %v91 = vrot.slane %v90, 2
    %v92 = vadd.f32 %v90, %v91
    %v93 = vrot.slane %v92, 1
    %v94 = vadd.f32 %v92, %v93
    %v95 = vsel %vm52, %v45, 0.0
    %v96 = vrot.slane %v95, 4
    %v97 = vadd.f32 %v95, %v96
    %v98 = vrot.slane %v97, 2
    %v99 = vadd.f32 %v97, %v98
    %v100 = vrot.slane %v99, 1
    %v101 = vadd.f32 %v99, %v100
    %v102 = vsel %vm52, %v49, 0.0
    %v103 = vrot.slane %v102, 4
    %v104 = vadd.f32 %v102, %v103
    %v105 = vrot.slane %v104, 2
    %v106 = vadd.f32 %v104, %v105
    %v107 = vrot.slane %v106, 1
    %v108 = vadd.f32 %v106, %v107
    %v109 = vmul.f32 %v87, 0.25
    %v110 = vmul.f32 %v94, 0.25
    %v111 = vmul.f32 %v101, 0.25
    %v112 = vmul.f32 %v108, 0.25
    %vm117 = vcmask 1041409
    %v118 = vsel %vm117, %v73, %v59
    %v119 = vsel %vm117, %v80, %v66
    %122 = vrot.lane.b32.xlu0 %v118, 17
    %v123 = vpop.permute.xlu0 %122
    %124 = vrot.lane.b32.xlu0 %v119, 17
    %v125 = vpop.permute.xlu0 %124
    %v126 = vlaneseq
    %v127 = vand.u32 %v126, 127
    %vm128 = vcmp.lt.s32.totalorder %v127, 17
    %v129 = vsel %vm128, %v123, %v125
    %v130 = vsel %vm128, %v125, %v123
    %v135 = vsel %vm117, %v111, %v109
    %v136 = vsel %vm117, %v112, %v110
    %139 = vrot.lane.b32.xlu0 %v135, 17
    %v140 = vpop.permute.xlu0 %139
    %141 = vrot.lane.b32.xlu0 %v136, 17
    %v142 = vpop.permute.xlu0 %141
    %v143 = vsel %vm128, %v140, %v142
    %v144 = vsel %vm128, %v142, %v140
    %v145 = vld [vmem:[#allocation6] ss:$8 sm:$0x3]
    %v147 = vlaneseq
    %v148 = vshrl.u32 %v147, 7
    %v149 = vsub.s32 0, %v148
    %v150 = vrot.slane %v145, %v149
    %v151 = vlaneseq
    %v152 = vshrl.u32 %v151, 7
    %v153 = vsub.s32 1, %v152
    %v154 = vrot.slane %v145, %v153
    %v157 = vmul.f32 %v130, %v150
    %v158 = vmul.f32 %v129, %v154
    %v159 = vadd.f32 %v157, 0.0
    %v160 = vadd.f32 %v158, 0.0
    %s161 = scalar_lea.vmem [#allocation6], 17
    %v162 = vld [vmem:[%s161] ss:$8 sm:$0x3]
    %v164 = vlaneseq
    %v165 = vshrl.u32 %v164, 7
    %v166 = vsub.s32 0, %v165
    %v167 = vrot.slane %v162, %v166
    %v168 = vlaneseq
    %v169 = vshrl.u32 %v168, 7
    %v170 = vsub.s32 1, %v169
    %v171 = vrot.slane %v162, %v170
    %v174 = vmul.f32 %v144, %v167
    %v175 = vmul.f32 %v143, %v171
    %v176 = vadd.f32 %v159, %v174
    %v177 = vadd.f32 %v160, %v175
    %178 = vrot.lane.b32.xlu0 %v118, 16
    %v179 = vpop.permute.xlu0 %178
    %180 = vrot.lane.b32.xlu0 %v119, 16
    %v181 = vpop.permute.xlu0 %180
    %vm182 = vcmp.lt.s32.totalorder %v127, 16
    %v183 = vsel %vm182, %v179, %v181
    %v184 = vsel %vm182, %v181, %v179
    %185 = vrot.lane.b32.xlu0 %v135, 16
    %v186 = vpop.permute.xlu0 %185
    %187 = vrot.lane.b32.xlu0 %v136, 16
    %v188 = vpop.permute.xlu0 %187
    %v189 = vsel %vm182, %v186, %v188
    %v190 = vsel %vm182, %v188, %v186
    %s191 = scalar_lea.vmem [#allocation6], 1
    %v192 = vld [vmem:[%s191] ss:$8 sm:$0x3]
    %v194 = vlaneseq
    %v195 = vshrl.u32 %v194, 7
    %v196 = vsub.s32 0, %v195
    %v197 = vrot.slane %v192, %v196
    %v198 = vlaneseq
    %v199 = vshrl.u32 %v198, 7
    %v200 = vsub.s32 1, %v199
    %v201 = vrot.slane %v192, %v200
    %v204 = vmul.f32 %v184, %v197
    %v205 = vmul.f32 %v183, %v201
    %v206 = vadd.f32 %v176, %v204
    %v207 = vadd.f32 %v177, %v205
    %s208 = scalar_lea.vmem [#allocation6], 18
    %v209 = vld [vmem:[%s208] ss:$8 sm:$0x3]
    %v211 = vlaneseq
    %v212 = vshrl.u32 %v211, 7
    %v213 = vsub.s32 0, %v212
    %v214 = vrot.slane %v209, %v213
    %v215 = vlaneseq
    %v216 = vshrl.u32 %v215, 7
    %v217 = vsub.s32 1, %v216
    %v218 = vrot.slane %v209, %v217
    %v221 = vmul.f32 %v190, %v214
    %v222 = vmul.f32 %v189, %v218
    %v223 = vadd.f32 %v206, %v221
    %v224 = vadd.f32 %v207, %v222
    %225 = vrot.lane.b32.xlu0 %v118, 15
    %v226 = vpop.permute.xlu0 %225
    %227 = vrot.lane.b32.xlu0 %v119, 15
    %v228 = vpop.permute.xlu0 %227
    %vm229 = vcmp.lt.s32.totalorder %v127, 15
    %v230 = vsel %vm229, %v226, %v228
    %v231 = vsel %vm229, %v228, %v226
    %232 = vrot.lane.b32.xlu0 %v135, 15
    %v233 = vpop.permute.xlu0 %232
    %234 = vrot.lane.b32.xlu0 %v136, 15
    %v235 = vpop.permute.xlu0 %234
    %v236 = vsel %vm229, %v233, %v235
    %v237 = vsel %vm229, %v235, %v233
    %s238 = scalar_lea.vmem [#allocation6], 2
    %v239 = vld [vmem:[%s238] ss:$8 sm:$0x3]
    %v241 = vlaneseq
    %v242 = vshrl.u32 %v241, 7
    %v243 = vsub.s32 0, %v242
    %v244 = vrot.slane %v239, %v243
    %v245 = vlaneseq
    %v246 = vshrl.u32 %v245, 7
    %v247 = vsub.s32 1, %v246
    %v248 = vrot.slane %v239, %v247
    %v251 = vmul.f32 %v231, %v244
    %v252 = vmul.f32 %v230, %v248
    %v253 = vadd.f32 %v223, %v251
    %v254 = vadd.f32 %v224, %v252
    %s255 = scalar_lea.vmem [#allocation6], 19
    %v256 = vld [vmem:[%s255] ss:$8 sm:$0x3]
    %v258 = vlaneseq
    %v259 = vshrl.u32 %v258, 7
    %v260 = vsub.s32 0, %v259
    %v261 = vrot.slane %v256, %v260
    %v262 = vlaneseq
    %v263 = vshrl.u32 %v262, 7
    %v264 = vsub.s32 1, %v263
    %v265 = vrot.slane %v256, %v264
    %v268 = vmul.f32 %v237, %v261
    %v269 = vmul.f32 %v236, %v265
    %v270 = vadd.f32 %v253, %v268
    %v271 = vadd.f32 %v254, %v269
    %272 = vrot.lane.b32.xlu0 %v118, 1
    %v273 = vpop.permute.xlu0 %272
    %274 = vrot.lane.b32.xlu0 %v119, 1
    %v275 = vpop.permute.xlu0 %274
    %vm276 = vcmp.lt.s32.totalorder %v127, 1
    %v277 = vsel %vm276, %v273, %v275
    %v278 = vsel %vm276, %v275, %v273
    %279 = vrot.lane.b32.xlu0 %v135, 1
    %v280 = vpop.permute.xlu0 %279
    %281 = vrot.lane.b32.xlu0 %v136, 1
    %v282 = vpop.permute.xlu0 %281
    %v283 = vsel %vm276, %v280, %v282
    %v284 = vsel %vm276, %v282, %v280
    %s285 = scalar_lea.vmem [#allocation6], 3
    %v286 = vld [vmem:[%s285] ss:$8 sm:$0x3]
    %v288 = vlaneseq
    %v289 = vshrl.u32 %v288, 7
    %v290 = vsub.s32 0, %v289
    %v291 = vrot.slane %v286, %v290
    %v292 = vlaneseq
    %v293 = vshrl.u32 %v292, 7
    %v294 = vsub.s32 1, %v293
    %v295 = vrot.slane %v286, %v294
    %v298 = vmul.f32 %v278, %v291
    %v299 = vmul.f32 %v277, %v295
    %v300 = vadd.f32 %v270, %v298
    %v301 = vadd.f32 %v271, %v299
    %s302 = scalar_lea.vmem [#allocation6], 20
    %v303 = vld [vmem:[%s302] ss:$8 sm:$0x3]
    %v305 = vlaneseq
    %v306 = vshrl.u32 %v305, 7
    %v307 = vsub.s32 0, %v306
    %v308 = vrot.slane %v303, %v307
    %v309 = vlaneseq
    %v310 = vshrl.u32 %v309, 7
    %v311 = vsub.s32 1, %v310
    %v312 = vrot.slane %v303, %v311
    %v315 = vmul.f32 %v284, %v308
    %v316 = vmul.f32 %v283, %v312
    %v317 = vadd.f32 %v300, %v315
    %v318 = vadd.f32 %v301, %v316
    %s319 = scalar_lea.vmem [#allocation6], 4
    %v320 = vld [vmem:[%s319] ss:$8 sm:$0x3]
    %v322 = vlaneseq
    %v323 = vshrl.u32 %v322, 7
    %v324 = vsub.s32 0, %v323
    %v325 = vrot.slane %v320, %v324
    %v326 = vlaneseq
    %v327 = vshrl.u32 %v326, 7
    %v328 = vsub.s32 1, %v327
    %v329 = vrot.slane %v320, %v328
    %v332 = vmul.f32 %v59, %v325
    %v333 = vmul.f32 %v66, %v329
    %v334 = vmul.f32 %v73, %v325
    %v335 = vmul.f32 %v80, %v329
    %v340 = vrot.slane %v334, 7
    %v341 = vsel %vm117, %v340, %v332
    %v342 = vrot.slane %v335, 7
    %v343 = vsel %vm117, %v342, %v333
    %v346 = vadd.f32 %v317, %v341
    %v347 = vadd.f32 %v318, %v343
    %s348 = scalar_lea.vmem [#allocation6], 21
    %v349 = vld [vmem:[%s348] ss:$8 sm:$0x3]
    %v351 = vlaneseq
    %v352 = vshrl.u32 %v351, 7
    %v353 = vsub.s32 0, %v352
    %v354 = vrot.slane %v349, %v353
    %v355 = vlaneseq
    %v356 = vshrl.u32 %v355, 7
    %v357 = vsub.s32 1, %v356
    %v358 = vrot.slane %v349, %v357
    %v361 = vmul.f32 %v109, %v354
    %v362 = vmul.f32 %v110, %v358
    %v363 = vmul.f32 %v111, %v354
    %v364 = vmul.f32 %v112, %v358
    %v369 = vrot.slane %v363, 7
    %v370 = vsel %vm117, %v369, %v361
    %v371 = vrot.slane %v364, 7
    %v372 = vsel %vm117, %v371, %v362
    %v375 = vadd.f32 %v346, %v370
    %v376 = vadd.f32 %v347, %v372
    %377 = vrot.lane.b32.xlu0 %v118, 127
    %v378 = vpop.permute.xlu0 %377
    %379 = vrot.lane.b32.xlu0 %v119, 127
    %v380 = vpop.permute.xlu0 %379
    %vm381 = vcmp.lt.s32.totalorder %v127, 127
    %v382 = vsel %vm381, %v378, %v380
    %v383 = vsel %vm381, %v380, %v378
    %384 = vrot.lane.b32.xlu0 %v135, 127
    %v385 = vpop.permute.xlu0 %384
    %386 = vrot.lane.b32.xlu0 %v136, 127
    %v387 = vpop.permute.xlu0 %386
    %v388 = vsel %vm381, %v385, %v387
    %v389 = vsel %vm381, %v387, %v385
    %s390 = scalar_lea.vmem [#allocation6], 5
    %v391 = vld [vmem:[%s390] ss:$8 sm:$0x3]
    %v393 = vlaneseq
    %v394 = vshrl.u32 %v393, 7
    %v395 = vsub.s32 0, %v394
    %v396 = vrot.slane %v391, %v395
    %v397 = vlaneseq
    %v398 = vshrl.u32 %v397, 7
    %v399 = vsub.s32 1, %v398
    %v400 = vrot.slane %v391, %v399
    %v403 = vmul.f32 %v382, %v396
    %v404 = vmul.f32 %v383, %v400
    %v405 = vadd.f32 %v375, %v403
    %v406 = vadd.f32 %v376, %v404
    %s407 = scalar_lea.vmem [#allocation6], 22
    %v408 = vld [vmem:[%s407] ss:$8 sm:$0x3]
    %v410 = vlaneseq
    %v411 = vshrl.u32 %v410, 7
    %v412 = vsub.s32 0, %v411
    %v413 = vrot.slane %v408, %v412
    %v414 = vlaneseq
    %v415 = vshrl.u32 %v414, 7
    %v416 = vsub.s32 1, %v415
    %v417 = vrot.slane %v408, %v416
    %v420 = vmul.f32 %v388, %v413
    %v421 = vmul.f32 %v389, %v417
    %v422 = vadd.f32 %v405, %v420
    %v423 = vadd.f32 %v406, %v421
    %424 = vrot.lane.b32.xlu0 %v118, 113
    %v425 = vpop.permute.xlu0 %424
    %426 = vrot.lane.b32.xlu0 %v119, 113
    %v427 = vpop.permute.xlu0 %426
    %vm428 = vcmp.lt.s32.totalorder %v127, 113
    %v429 = vsel %vm428, %v425, %v427
    %v430 = vsel %vm428, %v427, %v425
    %431 = vrot.lane.b32.xlu0 %v135, 113
    %v432 = vpop.permute.xlu0 %431
    %433 = vrot.lane.b32.xlu0 %v136, 113
    %v434 = vpop.permute.xlu0 %433
    %v435 = vsel %vm428, %v432, %v434
    %v436 = vsel %vm428, %v434, %v432
    %s437 = scalar_lea.vmem [#allocation6], 6
    %v438 = vld [vmem:[%s437] ss:$8 sm:$0x3]
    %v440 = vlaneseq
    %v441 = vshrl.u32 %v440, 7
    %v442 = vsub.s32 0, %v441
    %v443 = vrot.slane %v438, %v442
    %v444 = vlaneseq
    %v445 = vshrl.u32 %v444, 7
    %v446 = vsub.s32 1, %v445
    %v447 = vrot.slane %v438, %v446
    %v450 = vmul.f32 %v429, %v443
    %v451 = vmul.f32 %v430, %v447
    %v452 = vadd.f32 %v422, %v450
    %v453 = vadd.f32 %v423, %v451
    %s454 = scalar_lea.vmem [#allocation6], 23
    %v455 = vld [vmem:[%s454] ss:$8 sm:$0x3]
    %v457 = vlaneseq
    %v458 = vshrl.u32 %v457, 7
    %v459 = vsub.s32 0, %v458
    %v460 = vrot.slane %v455, %v459
    %v461 = vlaneseq
    %v462 = vshrl.u32 %v461, 7
    %v463 = vsub.s32 1, %v462
    %v464 = vrot.slane %v455, %v463
    %v467 = vmul.f32 %v435, %v460
    %v468 = vmul.f32 %v436, %v464
    %v469 = vadd.f32 %v452, %v467
    %v470 = vadd.f32 %v453, %v468
    %471 = vrot.lane.b32.xlu0 %v118, 112
    %v472 = vpop.permute.xlu0 %471
    %473 = vrot.lane.b32.xlu0 %v119, 112
    %v474 = vpop.permute.xlu0 %473
    %vm475 = vcmp.lt.s32.totalorder %v127, 112
    %v476 = vsel %vm475, %v472, %v474
    %v477 = vsel %vm475, %v474, %v472
    %478 = vrot.lane.b32.xlu0 %v135, 112
    %v479 = vpop.permute.xlu0 %478
    %480 = vrot.lane.b32.xlu0 %v136, 112
    %v481 = vpop.permute.xlu0 %480
    %v482 = vsel %vm475, %v479, %v481
    %v483 = vsel %vm475, %v481, %v479
    %s484 = scalar_lea.vmem [#allocation6], 7
    %v485 = vld [vmem:[%s484] ss:$8 sm:$0x3]
    %v487 = vlaneseq
    %v488 = vshrl.u32 %v487, 7
    %v489 = vsub.s32 0, %v488
    %v490 = vrot.slane %v485, %v489
    %v491 = vlaneseq
    %v492 = vshrl.u32 %v491, 7
    %v493 = vsub.s32 1, %v492
    %v494 = vrot.slane %v485, %v493
    %v497 = vmul.f32 %v476, %v490
    %v498 = vmul.f32 %v477, %v494
    %v499 = vadd.f32 %v469, %v497
    %v500 = vadd.f32 %v470, %v498
    %s501 = scalar_lea.vmem [#allocation6], 32
    %v502 = vld [vmem:[%s501] ss:$8 sm:$0x3]
    %v504 = vlaneseq
    %v505 = vshrl.u32 %v504, 7
    %v506 = vsub.s32 0, %v505
    %v507 = vrot.slane %v502, %v506
    %v508 = vlaneseq
    %v509 = vshrl.u32 %v508, 7
    %v510 = vsub.s32 1, %v509
    %v511 = vrot.slane %v502, %v510
    %v514 = vmul.f32 %v482, %v507
    %v515 = vmul.f32 %v483, %v511
    %v516 = vadd.f32 %v499, %v514
    %v517 = vadd.f32 %v500, %v515
    %518 = vrot.lane.b32.xlu0 %v118, 111
    %v519 = vpop.permute.xlu0 %518
    %520 = vrot.lane.b32.xlu0 %v119, 111
    %v521 = vpop.permute.xlu0 %520
    %vm522 = vcmp.lt.s32.totalorder %v127, 111
    %v523 = vsel %vm522, %v519, %v521
    %v524 = vsel %vm522, %v521, %v519
    %525 = vrot.lane.b32.xlu0 %v135, 111
    %v526 = vpop.permute.xlu0 %525
    %527 = vrot.lane.b32.xlu0 %v136, 111
    %v528 = vpop.permute.xlu0 %527
    %v529 = vsel %vm522, %v526, %v528
    %v530 = vsel %vm522, %v528, %v526
    %s531 = scalar_lea.vmem [#allocation6], 16
    %v532 = vld [vmem:[%s531] ss:$8 sm:$0x3]
    %v534 = vlaneseq
    %v535 = vshrl.u32 %v534, 7
    %v536 = vsub.s32 0, %v535
    %v537 = vrot.slane %v532, %v536
    %v538 = vlaneseq
    %v539 = vshrl.u32 %v538, 7
    %v540 = vsub.s32 1, %v539
    %v541 = vrot.slane %v532, %v540
    %v544 = vmul.f32 %v523, %v537
    %v545 = vmul.f32 %v524, %v541
    %v546 = vadd.f32 %v516, %v544
    %v547 = vadd.f32 %v517, %v545
    %s548 = scalar_lea.vmem [#allocation6], 33
    %v549 = vld [vmem:[%s548] ss:$8 sm:$0x3]
    %v551 = vlaneseq
    %v552 = vshrl.u32 %v551, 7
    %v553 = vsub.s32 0, %v552
    %v554 = vrot.slane %v549, %v553
    %v555 = vlaneseq
    %v556 = vshrl.u32 %v555, 7
    %v557 = vsub.s32 1, %v556
    %v558 = vrot.slane %v549, %v557
    %v561 = vmul.f32 %v529, %v554
    %v562 = vmul.f32 %v530, %v558
    %v563 = vadd.f32 %v546, %v561
    %v564 = vadd.f32 %v547, %v562
    %s565 = sld [smem:[#allocation2]]
    %v566 = vstv %s565
    %v567 = vadd.f32 %v563, %v566
    %v568 = vadd.f32 %v564, %v566
    %v569 = vmul.f32 %v567, 0.5
    %v570 = vmul.f32 %v568, 0.5
    %v571 = vtanh.pop %v569
    %v572 = vtanh.pop %v570
    %v573 = vmul.f32 %v571, 0.5
    %v574 = vmul.f32 %v572, 0.5
    %v575 = vadd.f32 %v573, 0.5
    %v576 = vadd.f32 %v574, 0.5
    %v579 = vcombine.low %v575, %v576
    %v581 = vunpack.c.l.s4 1966171168
    %v582 = vunpack.c.0.s8 %v581
    %v583 = vlaneseq
    %v584 = vshrl.u32 %v583, 7
    %v585 = vsub.s32 %v582, %v584
    %v586 = vrot.slane %v579, %v585
    %v587 = vcombine.high %v586, %v586
    %v589 = vunpack.c.l.s4 1966171168
    %v590 = vunpack.c.0.s8 %v589
    %v591 = vlaneseq
    %v592 = vshrl.u32 %v591, 7
    %v593 = vsub.s32 %v590, %v592
    %v594 = vrot.slane %v586, %v593
    %v596 = vunpack.c.l.s4 1966171168
    %v597 = vunpack.c.0.s8 %v596
    %v598 = vlaneseq
    %v599 = vshrl.u32 %v598, 7
    %v600 = vsub.s32 %v597, %v599
    %v601 = vrot.slane %v587, %v600
    %v604 = vlaneseq
    %vm605 = vcmp.ge.s32.totalorder %v604, 0
    %vm606 = vcmp.lt.s32.totalorder %v604, 256
    %vm607 = vmand %vm605, %vm606
    %608 = vst.msk [vmem:[#allocation8] sm:$0x3] %vm607, %v594
    %609 = vst.msk [vmem:[#allocation8 + $0x2] sm:$0x3] %vm607, %v601
    // Predicated region
    $region22: #{tpu_custom_call.1} parent=1 // pred_check
      _
    $region23: #{tpu_custom_call.1} parent=1 // pred_check_branch
      %611 = sbr.rel (0) target = $region25
    $region24: #{tpu_custom_call.1} parent=1 // pred_region
      %s613 = ssub.s32 64, 64
      %614 = vsyncadd [#allocation5], %s613
      %s615 = sshll.u32 [#allocation8], 4
      %s616 = int_to_ptr.vmem [resolvable:$true] %s615
      %621 = dma.vmem_to_hbm [thread:$0]  %s616, 64, %s3, [#allocation5], 32, 32, 2
    $region25: #{tpu_custom_call.1} parent=1 // pred_fallthru
      _
    // Predicated region
    $region26: #{tpu_custom_call.1} parent=1 // pred_check
      _
    $region27: #{tpu_custom_call.1} parent=1 // pred_check_branch
      %623 = sbr.rel (0) target = $region29
    $region28: #{tpu_custom_call.1} parent=1 // pred_region
      %624 = dma.done [#allocation5], 64
    $region29: #{tpu_custom_call.1} parent=1 // pred_fallthru
      _
    %625 = vsyncpa [#allocation4], 1
    %626 = vsyncpa [#allocation7], 1
    %627 = vsyncpa [#allocation5], 1

</llo_original>
